<compile_context>
chip_gen: v6e
topology: v6e:2x2x1
jax: 0.10.0
libtpu: 0.0.40
codegen_flags: <defaults>
</compile_context>

<pallas_src>
import functools

import jax
import jax.numpy as jnp
from jax.experimental import pallas as pl
from jax.experimental.pallas import tpu as pltpu


# ----------------------------------------------------------------------------
# Small helpers
# ----------------------------------------------------------------------------

def _pick_tile(n, target, align):
    """Largest tile <= target that divides n, preferring multiples of `align`."""
    if n <= target:
        return n
    t = (target // align) * align
    while t >= align:
        if n % t == 0:
            return t
        t -= align
    for t in range(min(target, n), 0, -1):
        if n % t == 0:
            return t
    return n


def _sum_all_2d(x):
    """Full 2D reduction via two single-axis reductions -> shape (1, 1)."""
    return jnp.sum(jnp.sum(x, axis=1, keepdims=True), axis=0, keepdims=True)


# ----------------------------------------------------------------------------
# Pallas kernels
# ----------------------------------------------------------------------------

def _make_mlp_kernel(with_residual):
    """Residual MLP block: out = x + gelu(x @ W1 + b1) @ W2 + b2.

    Grid = (row_tiles, hidden_tiles).  The hidden (H) axis is the reduction axis:
    a f32 VMEM accumulator holds the partial second matmul; the epilogue (bias,
    residual add, optional fused residual-vs-base subtraction) runs once at the
    last hidden tile.  Matmuls run in bf16 on the MXU with f32 accumulation.
    """

    def kernel(x_ref, w1_ref, b1_ref, w2_ref, b2_ref, *rest):
        if with_residual:
            base_ref, o_ref, res_ref, acc_ref = rest
        else:
            o_ref, acc_ref = rest

        j = pl.program_id(1)

        @pl.when(j == 0)
        def _init():
            acc_ref[...] = jnp.zeros_like(acc_ref)

        xb = x_ref[...].astype(jnp.bfloat16)
        h = jnp.dot(xb, w1_ref[...], preferred_element_type=jnp.float32)
        h = h + b1_ref[...].astype(jnp.float32)
        h = jax.nn.gelu(h)
        acc_ref[...] += jnp.dot(h.astype(jnp.bfloat16), w2_ref[...],
                                preferred_element_type=jnp.float32)

        @pl.when(j == pl.num_programs(1) - 1)
        def _finalize():
            y = acc_ref[...] + b2_ref[...].astype(jnp.float32)
            out = x_ref[...].astype(jnp.float32) + y
            o_ref[...] = out.astype(o_ref.dtype)
            if with_residual:
                res_ref[...] = (out - base_ref[...].astype(jnp.float32)).astype(res_ref.dtype)

    return kernel


def _l1_stats_kernel(t1_ref, t2_ref, diff_ref, norm_ref, acc_d_ref, acc_n_ref):
    """Tiled reduction: sum(|t1 - t2|) and sum(|t1|) accumulated over row tiles."""
    i = pl.program_id(0)

    @pl.when(i == 0)
    def _init():
        acc_d_ref[...] = jnp.zeros_like(acc_d_ref)
        acc_n_ref[...] = jnp.zeros_like(acc_n_ref)

    t1 = t1_ref[...].astype(jnp.float32)
    t2 = t2_ref[...].astype(jnp.float32)
    acc_d_ref[...] += _sum_all_2d(jnp.abs(t1 - t2))
    acc_n_ref[...] += _sum_all_2d(jnp.abs(t1))

    @pl.when(i == pl.num_programs(0) - 1)
    def _finalize():
        diff_ref[...] = acc_d_ref[...]
        norm_ref[...] = acc_n_ref[...]


def _add_kernel(a_ref, b_ref, o_ref):
    o_ref[...] = a_ref[...] + b_ref[...]


def _sub_kernel(a_ref, b_ref, o_ref):
    o_ref[...] = a_ref[...] - b_ref[...]


# ----------------------------------------------------------------------------
# pallas_call wrappers
# ----------------------------------------------------------------------------

_ROW_TILE_TARGET = 256    # rows of the flattened (B*S) axis per MLP tile
_HID_TILE_TARGET = 512    # hidden (H) columns per reduction step
_EW_TILE_TARGET = 512     # rows per elementwise / reduction tile
_VMEM_LIMIT = 32 * 1024 * 1024   # safe on v5e/v6e (128 MiB) and v7x (64 MiB) VMEM


def _mlp_pallas(x2d, w1, b1, w2, b2, base2d=None, out_dtype=None):
    M, D = x2d.shape
    H = w1.shape[1]
    tm = _pick_tile(M, _ROW_TILE_TARGET, 8)
    th = _pick_tile(H, _HID_TILE_TARGET, 128)
    grid = (M // tm, H // th)

    in_specs = [
        pl.BlockSpec((tm, D), lambda i, j: (i, 0)),   # x: per-row tile, resident across j
        pl.BlockSpec((D, th), lambda i, j: (0, j)),   # W1 tile: independent of row index i
        pl.BlockSpec((1, th), lambda i, j: (0, j)),   # b1 tile
        pl.BlockSpec((th, D), lambda i, j: (j, 0)),   # W2 tile
        pl.BlockSpec((1, D), lambda i, j: (0, 0)),    # b2: fetched once
    ]
    args = [x2d, w1, b1, w2, b2]
    with_res = base2d is not None
    if with_res:
        in_specs.append(pl.BlockSpec((tm, D), lambda i, j: (i, 0)))  # base
        args.append(base2d)
        out_shape = (jax.ShapeDtypeStruct((M, D), out_dtype),
                     jax.ShapeDtypeStruct((M, D), out_dtype))
        out_specs = (pl.BlockSpec((tm, D), lambda i, j: (i, 0)),
                     pl.BlockSpec((tm, D), lambda i, j: (i, 0)))
    else:
        out_shape = jax.ShapeDtypeStruct((M, D), out_dtype)
        out_specs = pl.BlockSpec((tm, D), lambda i, j: (i, 0))

    return pl.pallas_call(
        _make_mlp_kernel(with_res),
        out_shape=out_shape,
        grid=grid,
        in_specs=in_specs,
        out_specs=out_specs,
        scratch_shapes=[pltpu.VMEM((tm, D), jnp.float32)],
        compiler_params=pltpu.CompilerParams(
            dimension_semantics=("parallel", "arbitrary"),
            vmem_limit_bytes=_VMEM_LIMIT),
    )(*args)


@jax.jit
def mlp_block(x, w1, b1, w2, b2):
    """x: (B, S, D) -> (B, S, D).  Flattened to (B*S, D) for the tiled kernel."""
    B, S, D = x.shape
    out = _mlp_pallas(x.reshape(B * S, D), w1, b1, w2, b2, out_dtype=x.dtype)
    return out.reshape(B, S, D)


@jax.jit
def mlp_block_with_residual(x, w1, b1, w2, b2, base):
    """Like mlp_block, but also returns (out - base), fused into the kernel epilogue."""
    B, S, D = x.shape
    out, res = _mlp_pallas(x.reshape(B * S, D), w1, b1, w2, b2,
                           base2d=base.reshape(B * S, D), out_dtype=x.dtype)
    return out.reshape(B, S, D), res.reshape(B, S, D)


@jax.jit
def l1_stats(t1, t2):
    """Returns (sum(|t1 - t2|), sum(|t1|)) as f32 scalars (ratio equals the mean ratio)."""
    D = t1.shape[-1]
    t1f = t1.reshape(-1, D)
    t2f = t2.reshape(-1, D)
    M = t1f.shape[0]
    tm = _pick_tile(M, _EW_TILE_TARGET, 8)
    grid = (M // tm,)
    diff, norm = pl.pallas_call(
        _l1_stats_kernel,
        out_shape=(jax.ShapeDtypeStruct((1, 1), jnp.float32),
                   jax.ShapeDtypeStruct((1, 1), jnp.float32)),
        grid=grid,
        in_specs=[pl.BlockSpec((tm, D), lambda i: (i, 0)),
                  pl.BlockSpec((tm, D), lambda i: (i, 0))],
        out_specs=(pl.BlockSpec((1, 1), lambda i: (0, 0)),
                   pl.BlockSpec((1, 1), lambda i: (0, 0))),
        scratch_shapes=[pltpu.VMEM((1, 1), jnp.float32),
                        pltpu.VMEM((1, 1), jnp.float32)],
        compiler_params=pltpu.CompilerParams(
            dimension_semantics=("arbitrary",)),
    )(t1f, t2f)
    return diff[0, 0], norm[0, 0]


def _elementwise(kernel, a, b):
    shape = a.shape
    D = shape[-1]
    a2d = a.reshape(-1, D)
    b2d = b.reshape(-1, D)
    M = a2d.shape[0]
    tm = _pick_tile(M, _EW_TILE_TARGET, 8)
    grid = (M // tm,)
    out = pl.pallas_call(
        kernel,
        out_shape=jax.ShapeDtypeStruct((M, D), a.dtype),
        grid=grid,
        in_specs=[pl.BlockSpec((tm, D), lambda i: (i, 0)),
                  pl.BlockSpec((tm, D), lambda i: (i, 0))],
        out_specs=pl.BlockSpec((tm, D), lambda i: (i, 0)),
        compiler_params=pltpu.CompilerParams(
            dimension_semantics=("parallel",)),
    )(a2d, b2d)
    return out.reshape(shape)


elementwise_add = jax.jit(functools.partial(_elementwise, _add_kernel))
elementwise_sub = jax.jit(functools.partial(_elementwise, _sub_kernel))


# ----------------------------------------------------------------------------
# Synthetic transformer blocks (stand-ins for the List[Module] passed to __init__)
# Weights stored in bf16 (MXU fast path); biases in f32.
# ----------------------------------------------------------------------------

def _make_mlp_params(k1, k2, dim, hidden, scale=0.02):
    return (
        (scale * jax.random.normal(k1, (dim, hidden), jnp.float32)).astype(jnp.bfloat16),
        jnp.zeros((1, hidden), jnp.float32),
        (scale * jax.random.normal(k2, (hidden, dim), jnp.float32)).astype(jnp.bfloat16),
        jnp.zeros((1, dim), jnp.float32),
    )


class SyntheticTransformerBlock:
    """Dual-stream block: independent residual MLPs on the hidden & encoder streams."""

    def __init__(self, key, dim, hidden_mult=2):
        H = dim * hidden_mult
        ks = jax.random.split(key, 4)
        self.h_params = _make_mlp_params(ks[0], ks[1], dim, H)
        self.e_params = _make_mlp_params(ks[2], ks[3], dim, H)

    def __call__(self, hidden, encoder):
        return mlp_block(hidden, *self.h_params), mlp_block(encoder, *self.e_params)

    def forward_with_residual(self, hidden, encoder, hidden_base=None, encoder_base=None):
        """Same forward, but fuses (out - base) into the kernel epilogue when a base is given."""
        if hidden_base is not None:
            h_out, h_res = mlp_block_with_residual(hidden, *self.h_params, hidden_base)
        else:
            h_out, h_res = mlp_block(hidden, *self.h_params), None
        if encoder_base is not None:
            e_out, e_res = mlp_block_with_residual(encoder, *self.e_params, encoder_base)
        else:
            e_out, e_res = mlp_block(encoder, *self.e_params), None
        return h_out, e_out, h_res, e_res


class SyntheticSingleTransformerBlock:
    """Single-stream (token-wise) block used after the dual-stream blocks."""

    def __init__(self, key, dim, hidden_mult=2):
        H = dim * hidden_mult
        ks = jax.random.split(key, 2)
        self.params = _make_mlp_params(ks[0], ks[1], dim, H)

    def __call__(self, x):
        return mlp_block(x, *self.params)

    def forward_with_residual(self, x, base):
        return mlp_block_with_residual(x, *self.params, base)


# ----------------------------------------------------------------------------
# CachedTransformerBlocks (concrete first-block-cache implementation of the
# abstract methods, matching xfuser's FB-cache semantics)
# ----------------------------------------------------------------------------

class CachedTransformerBlocks:

    def __init__(self, transformer_blocks, single_transformer_blocks=None, *,
                 rel_l1_thresh=0.6, return_hidden_states_first=True,
                 num_steps=-1, name="default"):
        self.transformer_blocks = list(transformer_blocks)
        self.single_transformer_blocks = (
            list(single_transformer_blocks) if single_transformer_blocks else None)
        self.cnt = 0
        self.accumulated_rel_l1_distance = jnp.zeros((1,), jnp.float32)
        self.use_cache = False
        self.rel_l1_thresh = jnp.asarray(rel_l1_thresh, jnp.float32)
        self.return_hidden_states_first = return_hidden_states_first
        self.num_steps = num_steps
        self.name = name
        # CacheContext buffers
        self.original_hidden_states = None
        self.original_encoder_hidden_states = None
        self.hidden_states_residual = None
        self.encoder_hidden_states_residual = None
        self.modulated_inputs = None

    # all_reduce omitted: single-device (is_parallelized == False path), identity.
    def l1_distance(self, t1, t2):
        diff, norm = l1_stats(t1, t2)               # tiled Pallas reduction kernel
        return diff / jnp.maximum(norm, jnp.float32(1e-12))   # eps: avoid NaN on all-zero t1

    def are_two_tensor_similar(self, t1, t2, threshold):
        return self.l1_distance(t1, t2) < threshold

    def get_start_idx(self):
        return 1

    def get_modulated_inputs(self, hidden_states, encoder_hidden_states):
        block0 = self.transformer_blocks[0]
        if self.return_hidden_states_first and hasattr(block0, "forward_with_residual"):
            # Residual (block_out - input) fused into the first block's MLP epilogue.
            hidden, encoder, first_residual, _ = block0.forward_with_residual(
                hidden_states, encoder_hidden_states,
                hidden_base=hidden_states, encoder_base=None)
        else:
            hidden, encoder = block0(hidden_states, encoder_hidden_states)
            if not self.return_hidden_states_first:
                hidden, encoder = encoder, hidden
            first_residual = elementwise_sub(hidden, hidden_states)
        prev_residual = self.modulated_inputs
        self.modulated_inputs = first_residual
        return first_residual, prev_residual, hidden, encoder

    def process_blocks(self, start_idx, hidden, encoder):
        blocks = self.transformer_blocks[start_idx:]
        if self.single_transformer_blocks:
            for block in blocks:
                hidden, encoder = block(hidden, encoder)
                if not self.return_hidden_states_first:
                    hidden, encoder = encoder, hidden
            # The reference module concatenates [encoder, hidden] along seq before the
            # single-stream blocks.  The synthetic single blocks here are token-wise,
            # so running the two streams separately is mathematically identical and
            # removes the concat + split (3 extra full HBM copies per step).
            # TODO(synk): real attention single-blocks mix tokens across the concatenated
            # sequence; those need the concat (or a 2-entry leading grid axis).
            singles = self.single_transformer_blocks
            for block in singles[:-1]:
                encoder = block(encoder)
                hidden = block(hidden)
            last = singles[-1]
            if hasattr(last, "forward_with_residual"):
                encoder, enc_res = last.forward_with_residual(
                    encoder, self.original_encoder_hidden_states)
                hidden, hid_res = last.forward_with_residual(
                    hidden, self.original_hidden_states)
            else:
                encoder = last(encoder)
                hidden = last(hidden)
                hid_res = elementwise_sub(hidden, self.original_hidden_states)
                enc_res = elementwise_sub(encoder, self.original_encoder_hidden_states)
        else:
            if blocks and self.return_hidden_states_first \
                    and hasattr(blocks[-1], "forward_with_residual"):
                for block in blocks[:-1]:
                    hidden, encoder = block(hidden, encoder)
                hidden, encoder, hid_res, enc_res = blocks[-1].forward_with_residual(
                    hidden, encoder,
                    hidden_base=self.original_hidden_states,
                    encoder_base=self.original_encoder_hidden_states)
            else:
                for block in blocks:
                    hidden, encoder = block(hidden, encoder)
                    if not self.return_hidden_states_first:
                        hidden, encoder = encoder, hidden
                hid_res = elementwise_sub(hidden, self.original_hidden_states)
                enc_res = elementwise_sub(encoder, self.original_encoder_hidden_states)
        self.hidden_states_residual = hid_res
        self.encoder_hidden_states_residual = enc_res
        return hidden, encoder

    def forward(self, hidden_states, encoder_hidden_states):
        modulated, prev_modulated, orig_hidden, orig_encoder = \
            self.get_modulated_inputs(hidden_states, encoder_hidden_states)
        self.original_hidden_states = orig_hidden
        self.original_encoder_hidden_states = orig_encoder
        if prev_modulated is not None:
            # TODO(synk): bool() forces a device->host sync (as the torch `if self.use_cache:`
            # does); keeping it on-device via lax.cond would require tracing both branches,
            # defeating the purpose of skipping the blocks.
            self.use_cache = bool(self.are_two_tensor_similar(
                prev_modulated, modulated, self.rel_l1_thresh))
        else:
            self.use_cache = False
        if self.use_cache:
            hidden = elementwise_add(hidden_states, self.hidden_states_residual)
            encoder = elementwise_add(encoder_hidden_states,
                                      self.encoder_hidden_states_residual)
        else:
            hidden, encoder = self.process_blocks(self.get_start_idx(),
                                                  orig_hidden, orig_encoder)
        self.cnt += 1
        return ((hidden, encoder) if self.return_hidden_states_first
                else (encoder, hidden))

    __call__ = forward


# ----------------------------------------------------------------------------
# Demo
# ----------------------------------------------------------------------------

if __name__ == "__main__":
    key = jax.random.PRNGKey(0)
    B, S, S_ENC, D = 2, 8, 8, 32

    k_in, k_enc, k_b0, k_b1, k_s0 = jax.random.split(key, 5)
    hidden_states = jax.random.normal(k_in, (B, S, D), jnp.float32)
    encoder_hidden_states = jax.random.normal(k_enc, (B, S_ENC, D), jnp.float32)

    blocks = [SyntheticTransformerBlock(k_b0, D),
              SyntheticTransformerBlock(k_b1, D)]
    single_blocks = [SyntheticSingleTransformerBlock(k_s0, D)]

    model = CachedTransformerBlocks(
        blocks, single_blocks, rel_l1_thresh=0.6,
        return_hidden_states_first=True, num_steps=8, name="default")

    # Step 1: no previous modulated inputs -> full block path (cache miss).
    h1, e1 = model(hidden_states, encoder_hidden_states)
    # Step 2: identical inputs -> relative L1 distance ~0 -> cached residual path.
    h2, e2 = model(hidden_states, encoder_hidden_states)

    jax.block_until_ready((h1, e1, h2, e2))
    assert h1.shape == (B, S, D) and e1.shape == (B, S_ENC, D)
    assert h2.shape == (B, S, D) and e2.shape == (B, S_ENC, D)
    print("KERNEL_OK")
</pallas_src>

<mosaic_0001>
module attributes {stable_mosaic.version = 11 : i64} {
  func.func @kernel(%arg0: i32, %arg1: i32, %arg2: memref<16x32xf32, #tpu.memory_space<vmem>>, %arg3: memref<32x64xbf16, #tpu.memory_space<vmem>>, %arg4: memref<1x64xf32, #tpu.memory_space<vmem>>, %arg5: memref<64x32xbf16, #tpu.memory_space<vmem>>, %arg6: memref<1x32xf32, #tpu.memory_space<vmem>>, %arg7: memref<16x32xf32, #tpu.memory_space<vmem>>, %arg8: memref<16x32xf32, #tpu.memory_space<vmem>>, %arg9: memref<16x32xf32, #tpu.memory_space<vmem>>, %arg10: memref<16x32xf32, #tpu.memory_space<vmem>>) attributes {dimension_semantics = [#tpu.dimension_semantics<parallel>, #tpu.dimension_semantics<arbitrary>], iteration_bounds = array<i64: 1, 1>, scalar_prefetch = 0 : i64, scratch_operands = 1 : i64, tpu.core_type = #tpu.core_type<tc>, window_params = [{transform_indices = @transform_0, window_bounds = array<i64: 16, 32>}, {transform_indices = @transform_1, window_bounds = array<i64: 32, 64>}, {transform_indices = @transform_2, window_bounds = array<i64: 1, 64>}, {transform_indices = @transform_3, window_bounds = array<i64: 64, 32>}, {pipeline_mode = #tpu.pipeline_mode<synchronous>, transform_indices = @transform_4, window_bounds = array<i64: 1, 32>}, {transform_indices = @transform_5, window_bounds = array<i64: 16, 32>}, {transform_indices = @transform_6, window_bounds = array<i64: 16, 32>}, {transform_indices = @transform_7, window_bounds = array<i64: 16, 32>}]} {
    %c0_i32 = arith.constant 0 : i32
    %0 = arith.cmpi eq, %arg1, %c0_i32 : i32
    %1 = arith.extui %0 : i1 to i32
    %c0_i32_0 = arith.constant 0 : i32
    %2 = arith.cmpi ne, %1, %c0_i32_0 : i32
    scf.if %2 {
      %cst_19 = arith.constant 0.000000e+00 : f32
      %32 = vector.broadcast %cst_19 : f32 to vector<16x32xf32>
      %c0_20 = arith.constant 0 : index
      %c0_21 = arith.constant 0 : index
      %33 = vector.load %arg10[%c0_20, %c0_21] : memref<16x32xf32, #tpu.memory_space<vmem>>, vector<16x32xf32>
      tpu.vector_store %arg10[%c0_20, %c0_21], %32 {strides = array<i32>} : memref<16x32xf32, #tpu.memory_space<vmem>>, vector<16x32xf32>,
    } else {
    }
    %c0 = arith.constant 0 : index
    %c0_1 = arith.constant 0 : index
    %3 = vector.load %arg2[%c0, %c0_1] : memref<16x32xf32, #tpu.memory_space<vmem>>, vector<16x32xf32>
    %4 = arith.truncf %3 : vector<16x32xf32> to vector<16x32xbf16>
    %c0_2 = arith.constant 0 : index
    %c0_3 = arith.constant 0 : index
    %5 = vector.load %arg3[%c0_2, %c0_3] : memref<32x64xbf16, #tpu.memory_space<vmem>>, vector<32x64xbf16>
    %cst = arith.constant dense<0.000000e+00> : vector<16x64xf32>
    %6 = tpu.matmul %4, %5, %cst {dimension_numbers = #tpu.dot_dimension_numbers<[1], [0], [0], [1], [0, 0, 1, 1], [], []>} : vector<16x32xbf16>, vector<32x64xbf16>, vector<16x64xf32> -> vector<16x64xf32>
    %c0_4 = arith.constant 0 : index
    %c0_5 = arith.constant 0 : index
    %7 = vector.load %arg4[%c0_4, %c0_5] : memref<1x64xf32, #tpu.memory_space<vmem>>, vector<1x64xf32>
    %8 = vector.broadcast %7 : vector<1x64xf32> to vector<16x64xf32>
    %9 = arith.addf %6, %8 : vector<16x64xf32>
    %10 = arith.mulf %9, %9 : vector<16x64xf32>
    %11 = arith.mulf %9, %10 : vector<16x64xf32>
    %cst_6 = arith.constant 4.471500e-02 : f32
    %12 = vector.broadcast %cst_6 : f32 to vector<16x64xf32>
    %13 = arith.mulf %12, %11 : vector<16x64xf32>
    %14 = arith.addf %9, %13 : vector<16x64xf32>
    %cst_7 = arith.constant 0.797884583 : f32
    %15 = vector.broadcast %cst_7 : f32 to vector<16x64xf32>
    %16 = arith.mulf %15, %14 : vector<16x64xf32>
    %17 = math.tanh %16 : vector<16x64xf32>
    %cst_8 = arith.constant 1.000000e+00 : f32
    %18 = vector.broadcast %cst_8 : f32 to vector<16x64xf32>
    %19 = arith.addf %18, %17 : vector<16x64xf32>
    %cst_9 = arith.constant 5.000000e-01 : f32
    %20 = vector.broadcast %cst_9 : f32 to vector<16x64xf32>
    %21 = arith.mulf %20, %19 : vector<16x64xf32>
    %22 = arith.mulf %9, %21 : vector<16x64xf32>
    %c0_10 = arith.constant 0 : index
    %c0_11 = arith.constant 0 : index
    %23 = vector.load %arg10[%c0_10, %c0_11] : memref<16x32xf32, #tpu.memory_space<vmem>>, vector<16x32xf32>
    %24 = arith.truncf %22 : vector<16x64xf32> to vector<16x64xbf16>
    %c0_12 = arith.constant 0 : index
    %c0_13 = arith.constant 0 : index
    %25 = vector.load %arg5[%c0_12, %c0_13] : memref<64x32xbf16, #tpu.memory_space<vmem>>, vector<64x32xbf16>
    %cst_14 = arith.constant dense<0.000000e+00> : vector<16x32xf32>
    %26 = tpu.matmul %24, %25, %cst_14 {dimension_numbers = #tpu.dot_dimension_numbers<[1], [0], [0], [1], [0, 0, 1, 1], [], []>} : vector<16x64xbf16>, vector<64x32xbf16>, vector<16x32xf32> -> vector<16x32xf32>
    %27 = arith.addf %23, %26 : vector<16x32xf32>
    %c0_15 = arith.constant 0 : index
    %c0_16 = arith.constant 0 : index
    %28 = vector.load %arg10[%c0_15, %c0_16] : memref<16x32xf32, #tpu.memory_space<vmem>>, vector<16x32xf32>
    tpu.vector_store %arg10[%c0_15, %c0_16], %27 {strides = array<i32>} : memref<16x32xf32, #tpu.memory_space<vmem>>, vector<16x32xf32>,
    %c0_i32_17 = arith.constant 0 : i32
    %29 = arith.cmpi eq, %arg1, %c0_i32_17 : i32
    %30 = arith.extui %29 : i1 to i32
    %c0_i32_18 = arith.constant 0 : i32
    %31 = arith.cmpi ne, %30, %c0_i32_18 : i32
    scf.if %31 {
      %c0_19 = arith.constant 0 : index
      %c0_20 = arith.constant 0 : index
      %32 = vector.load %arg10[%c0_19, %c0_20] : memref<16x32xf32, #tpu.memory_space<vmem>>, vector<16x32xf32>
      %c0_21 = arith.constant 0 : index
      %c0_22 = arith.constant 0 : index
      %33 = vector.load %arg6[%c0_21, %c0_22] : memref<1x32xf32, #tpu.memory_space<vmem>>, vector<1x32xf32>
      %34 = vector.broadcast %33 : vector<1x32xf32> to vector<16x32xf32>
      %35 = arith.addf %32, %34 : vector<16x32xf32>
      %c0_23 = arith.constant 0 : index
      %c0_24 = arith.constant 0 : index
      %36 = vector.load %arg2[%c0_23, %c0_24] : memref<16x32xf32, #tpu.memory_space<vmem>>, vector<16x32xf32>
      %37 = arith.addf %36, %35 : vector<16x32xf32>
      %c0_25 = arith.constant 0 : index
      %c0_26 = arith.constant 0 : index
      %38 = vector.load %arg8[%c0_25, %c0_26] : memref<16x32xf32, #tpu.memory_space<vmem>>, vector<16x32xf32>
      tpu.vector_store %arg8[%c0_25, %c0_26], %37 {strides = array<i32>} : memref<16x32xf32, #tpu.memory_space<vmem>>, vector<16x32xf32>,
      %c0_27 = arith.constant 0 : index
      %c0_28 = arith.constant 0 : index
      %39 = vector.load %arg7[%c0_27, %c0_28] : memref<16x32xf32, #tpu.memory_space<vmem>>, vector<16x32xf32>
      %40 = arith.subf %37, %39 : vector<16x32xf32>
      %c0_29 = arith.constant 0 : index
      %c0_30 = arith.constant 0 : index
      %41 = vector.load %arg9[%c0_29, %c0_30] : memref<16x32xf32, #tpu.memory_space<vmem>>, vector<16x32xf32>
      tpu.vector_store %arg9[%c0_29, %c0_30], %40 {strides = array<i32>} : memref<16x32xf32, #tpu.memory_space<vmem>>, vector<16x32xf32>,
    } else {
    }
    return
  }
  func.func @transform_0(%arg0: i32, %arg1: i32) -> (i32, i32) {
    %c0_i32 = arith.constant 0 : i32
    %c0_i32_0 = arith.constant 0 : i32
    return %arg0, %c0_i32 : i32, i32
  }
  func.func @transform_1(%arg0: i32, %arg1: i32) -> (i32, i32) {
    %c0_i32 = arith.constant 0 : i32
    %c0_i32_0 = arith.constant 0 : i32
    return %c0_i32, %arg1 : i32, i32
  }
  func.func @transform_2(%arg0: i32, %arg1: i32) -> (i32, i32) {
    %c0_i32 = arith.constant 0 : i32
    %c0_i32_0 = arith.constant 0 : i32
    return %c0_i32, %arg1 : i32, i32
  }
  func.func @transform_3(%arg0: i32, %arg1: i32) -> (i32, i32) {
    %c0_i32 = arith.constant 0 : i32
    %c0_i32_0 = arith.constant 0 : i32
    return %arg1, %c0_i32 : i32, i32
  }
  func.func @transform_4(%arg0: i32, %arg1: i32) -> (i32, i32) {
    %c0_i32 = arith.constant 0 : i32
    %c0_i32_0 = arith.constant 0 : i32
    %c0_i32_1 = arith.constant 0 : i32
    return %c0_i32, %c0_i32_0 : i32, i32
  }
  func.func @transform_5(%arg0: i32, %arg1: i32) -> (i32, i32) {
    %c0_i32 = arith.constant 0 : i32
    %c0_i32_0 = arith.constant 0 : i32
    return %arg0, %c0_i32 : i32, i32
  }
  func.func @transform_6(%arg0: i32, %arg1: i32) -> (i32, i32) {
    %c0_i32 = arith.constant 0 : i32
    %c0_i32_0 = arith.constant 0 : i32
    return %arg0, %c0_i32 : i32, i32
  }
  func.func @transform_7(%arg0: i32, %arg1: i32) -> (i32, i32) {
    %c0_i32 = arith.constant 0 : i32
    %c0_i32_0 = arith.constant 0 : i32
    return %arg0, %c0_i32 : i32, i32
  }
}

</mosaic_0001>

<llo_original>
// kernel: mlp_block_with_residual.1
$region0: #{mlp_block_with_residual.1}
  #allocation0 [shape = 'u32[]', space=smem, size = 0x4, offset = 0x4, fixed_abs, tag = 'smem constant byte address 0x4 - core index']
  #allocation1 [shape = 'u32[144,128]{1,0:T(1,128)}', space=vmem, size = 0x12000, scoped, tag = 'internal scratch']
  #allocation2 [shape = 'f32[16,32]{1,0:T(8,128)}', space=vmem, size = 0x2000, scoped, tag = 'scratch operand']
  %s0 = inlined_call_operand.vmem [shape: f32[16,32], index: 0, kind: input, shape index: {}]
  %s1 = inlined_call_operand.vmem [shape: bf16[32,64], index: 1, kind: input, shape index: {}]
  %s2 = inlined_call_operand.vmem [shape: f32[1,64], index: 2, kind: input, shape index: {}]
  %s3 = inlined_call_operand.vmem [shape: bf16[64,32], index: 3, kind: input, shape index: {}]
  %s4 = inlined_call_operand.vmem [shape: f32[1,32], index: 4, kind: input, shape index: {}]
  %s5 = inlined_call_operand.vmem [shape: f32[16,32], index: 5, kind: input, shape index: {}]
  %s6 = inlined_call_operand.hbm [shape: f32[16,32], index: 6, kind: output, shape index: {0}]
  %s7 = inlined_call_operand.hbm [shape: f32[16,32], index: 7, kind: output, shape index: {1}]
  %8 = xla_tuple %s6, %s7
  %s9 = sld [smem:[#allocation0]]
  $region50: #{mlp_block_with_residual.1} parent=0
    _
  %s11 = ssub.s32 1, %s9
  %s12 = scalar_select 0, %s11, %s9
  $region1: #{mlp_block_with_residual.1} parent=0
    #allocation3 [shape = 'u8[8192]{0}', space=vmem, size = 0x2000, scoped, tag = 'output window, operand 0, single buffered']
    #allocation4 [shape = 's32[1]{0}', space=sflag, size = 0x4, scoped, tag = 'scoped memory for mlp_block_with_residual.1']
    #allocation5 [shape = 'u8[8192]{0}', space=vmem, size = 0x2000, scoped, tag = 'output window, operand 1, single buffered']
    #allocation6 [shape = 's32[1]{0}', space=sflag, size = 0x4, scoped, tag = 'scoped memory for mlp_block_with_residual.1']
    %13 = vsyncpa [#allocation4], 0
    %14 = vsyncpa [#allocation6], 0
    // Predicated region
    $region2: #{mlp_block_with_residual.1} parent=1 // pred_check
      _
    $region3: #{mlp_block_with_residual.1} parent=1 // pred_check_branch
      %16 = sbr.rel (0) target = $region5
    $region4: #{mlp_block_with_residual.1} parent=1 // pred_region
      _
    $region5: #{mlp_block_with_residual.1} parent=1 // pred_fallthru
      _
    // Predicated region
    $region6: #{mlp_block_with_residual.1} parent=1 // pred_check
      _
    $region7: #{mlp_block_with_residual.1} parent=1 // pred_check_branch
      %18 = sbr.rel (0) target = $region9
    $region8: #{mlp_block_with_residual.1} parent=1 // pred_region
      _
    $region9: #{mlp_block_with_residual.1} parent=1 // pred_fallthru
      _
    // Predicated region
    $region10: #{mlp_block_with_residual.1} parent=1 // pred_check
      _
    $region11: #{mlp_block_with_residual.1} parent=1 // pred_check_branch
      %20 = sbr.rel (0) target = $region13
    $region12: #{mlp_block_with_residual.1} parent=1 // pred_region
      _
    $region13: #{mlp_block_with_residual.1} parent=1 // pred_fallthru
      _
    // Predicated region
    $region14: #{mlp_block_with_residual.1} parent=1 // pred_check
      _
    $region15: #{mlp_block_with_residual.1} parent=1 // pred_check_branch
      %22 = sbr.rel (0) target = $region17
    $region16: #{mlp_block_with_residual.1} parent=1 // pred_region
      _
    $region17: #{mlp_block_with_residual.1} parent=1 // pred_fallthru
      _
    // Predicated region
    $region18: #{mlp_block_with_residual.1} parent=1 // pred_check
      _
    $region19: #{mlp_block_with_residual.1} parent=1 // pred_check_branch
      %24 = sbr.rel (0) target = $region21
    $region20: #{mlp_block_with_residual.1} parent=1 // pred_region
      _
    $region21: #{mlp_block_with_residual.1} parent=1 // pred_fallthru
      _
    // Predicated region
    $region22: #{mlp_block_with_residual.1} parent=1 // pred_check
      _
    $region23: #{mlp_block_with_residual.1} parent=1 // pred_check_branch
      %26 = sbr.rel (0) target = $region25
    $region24: #{mlp_block_with_residual.1} parent=1 // pred_region
      _
    $region25: #{mlp_block_with_residual.1} parent=1 // pred_fallthru
      _
    %p28 = scmp.eq.s32.totalorder 0, 0
    // Predicated region
    $region26: #{mlp_block_with_residual.1} parent=1 // pred_check
      %p29 = pneg %p28
    $region27: #{mlp_block_with_residual.1} parent=1 // pred_check_branch
      %31 = sbr.rel (%p29) target = $region29
    $region28: #{mlp_block_with_residual.1} parent=1 // pred_region
      %vm32 = vcmask 261120
      %33 = vst.msk [vmem:[#allocation2] sm:$0xff] %vm32, 0.0
      %34 = vst.msk [vmem:[#allocation2 + $0x8] sm:$0xff] %vm32, 0.0
    $region29: #{mlp_block_with_residual.1} parent=1 // pred_fallthru
      _
    %v35 = vld [vmem:[%s0] sm:$0xff]
    %v36 = vld [vmem:[%s0 + $0x8] sm:$0xff]
    %v37 = vpack.c.bf16 %v36, %v35
    %v38 = vld [vmem:[%s1] sm:$0xf]
    %v39 = vld [vmem:[%s1 + $0x4] sm:$0xf]
    %v40 = vld [vmem:[%s1 + $0x8] sm:$0xf]
    %v41 = vld [vmem:[%s1 + $0xc] sm:$0xf]
    %v42 = vld [vmem:[%s2] sm:$0x1]
    %v44 = vlaneseq
    %v45 = vshrl.u32 %v44, 7
    %v46 = vsub.s32 0, %v45
    %v47 = vrot.slane %v42, %v46
    %v53 = vunpack.c.l.b16 %v38
    %v54 = vunpack.c.l.b16 %v39
    %v55 = vunpack.c.l.b16 %v40
    %v56 = vunpack.c.l.b16 %v41
    %v57 = vpack.c.b16 %v54, %v53
    %v58 = vpack.c.b16 %v56, %v55
    %vm61 = vcmask 261120
    %v63 = vsel %vm61, %v37, 0
    %65 = vmatprep.subr.bf16.mxu0 0
    %66 = vmatpush1.bf16.msra.mxu0 0
    %67 = vmatprep.subr.bf16.mxu0 0
    %68 = vmatpush1.bf16.msra.mxu0 0
    %69 = vmatprep.subr.bf16.mxu0 0
    %70 = vmatpush1.bf16.msra.mxu0 0
    %71 = vmatprep.subr.bf16.mxu0 0
    %72 = vmatpush1.bf16.msra.mxu0 0
    %73 = vmatprep.subr.bf16.mxu0 0
    %74 = vmatpush1.bf16.msra.mxu0 0
    %75 = vmatprep.subr.bf16.mxu0 0
    %76 = vmatpush1.bf16.msra.mxu0 0
    %77 = vmatprep.subr.bf16.mxu0 0
    %78 = vmatpush1.bf16.msra.mxu0 %v58
    %79 = vmatprep.subr.bf16.mxu0 0
    %80 = vmatpush1.bf16.msra.mxu0 %v57
    %81 = vmatprep.subr.bf16.mxu0 0
    %82 = vmatpush2.bf16.msra.mxu0 0
    %83 = vmatprep.subr.bf16.mxu0 0
    %84 = vmatpush2.bf16.msra.mxu0 0
    %85 = vmatprep.subr.bf16.mxu0 0
    %86 = vmatpush2.bf16.msra.mxu0 0
    %87 = vmatprep.subr.bf16.mxu0 0
    %88 = vmatpush2.bf16.msra.mxu0 0
    %89 = vmatprep.subr.bf16.mxu0 0
    %90 = vmatpush2.bf16.msra.mxu0 0
    %91 = vmatprep.subr.bf16.mxu0 0
    %92 = vmatpush2.bf16.msra.mxu0 0
    %93 = vmatprep.subr.bf16.mxu0 0
    %94 = vmatpush2.bf16.msra.mxu0 0
    %95 = vmatprep.subr.bf16.mxu0 0
    %96 = vmatpush2.bf16.msra.mxu0 0
    %97 = vmatprep.mubr.bf16.mxu0 0
    %98 = vmatmul.mubr.bf16.gmra.mxu0 %v63
    %v99 = vpop.f32.mrf.mxu0
    %v100 = vadd.f32 %v47, %v99
    %v101 = vpop.f32.mrf.mxu0
    %v102 = vpop.f32.mrf.mxu0
    %v103 = vadd.f32 %v47, %v102
    %v104 = vpop.f32.mrf.mxu0
    %105 = vdwg.mxu0
    %v106 = vmul.f32 %v100, %v100
    %v107 = vmul.f32 %v103, %v103
    %v108 = vmul.f32 %v100, %v106
    %v109 = vmul.f32 %v103, %v107
    %v110 = vmul.f32 %v108, 0.044715
    %v111 = vmul.f32 %v109, 0.044715
    %v112 = vadd.f32 %v100, %v110
    %v113 = vadd.f32 %v103, %v111
    %v114 = vmul.f32 %v112, 0.7978846
    %v115 = vmul.f32 %v113, 0.7978846
    %v116 = vtanh.pop %v114
    %v117 = vtanh.pop %v115
    %v118 = vadd.f32 %v116, 1.0
    %v119 = vadd.f32 %v117, 1.0
    %v120 = vmul.f32 %v118, 0.5
    %v121 = vmul.f32 %v119, 0.5
    %v122 = vmul.f32 %v100, %v120
    %v123 = vmul.f32 %v103, %v121
    %v124 = vld [vmem:[#allocation2] sm:$0xff]
    %v125 = vld [vmem:[#allocation2 + $0x8] sm:$0xff]
    %v126 = vpack.c.bf16 %v123, %v122
    %v127 = vld [vmem:[%s3] sm:$0xf]
    %v128 = vld [vmem:[%s3 + $0x4] sm:$0xf]
    %v129 = vld [vmem:[%s3 + $0x8] sm:$0xf]
    %v130 = vld [vmem:[%s3 + $0xc] sm:$0xf]
    %v131 = vld [vmem:[%s3 + $0x10] sm:$0xf]
    %v132 = vld [vmem:[%s3 + $0x14] sm:$0xf]
    %v133 = vld [vmem:[%s3 + $0x18] sm:$0xf]
    %v134 = vld [vmem:[%s3 + $0x1c] sm:$0xf]
    %v143 = vunpack.c.l.b16 %v127
    %v144 = vunpack.c.l.b16 %v128
    %v145 = vunpack.c.l.b16 %v129
    %v146 = vunpack.c.l.b16 %v130
    %v147 = vunpack.c.l.b16 %v131
    %v148 = vunpack.c.l.b16 %v132
    %v149 = vunpack.c.l.b16 %v133
    %v150 = vunpack.c.l.b16 %v134
    %v151 = vpack.c.b16 %v144, %v143
    %v152 = vpack.c.b16 %v146, %v145
    %v153 = vpack.c.b16 %v148, %v147
    %v154 = vpack.c.b16 %v150, %v149
    %vm159 = vcmask 523264
    %v161 = vsel %vm159, %v126, 0
    %163 = vmatprep.subr.bf16.mxu0 0
    %164 = vmatpush1.bf16.msra.mxu0 0
    %165 = vmatprep.subr.bf16.mxu0 0
    %166 = vmatpush1.bf16.msra.mxu0 0
    %167 = vmatprep.subr.bf16.mxu0 0
    %168 = vmatpush1.bf16.msra.mxu0 0
    %169 = vmatprep.subr.bf16.mxu0 0
    %170 = vmatpush1.bf16.msra.mxu0 0
    %171 = vmatprep.subr.bf16.mxu0 0
    %172 = vmatpush1.bf16.msra.mxu0 %v154
    %173 = vmatprep.subr.bf16.mxu0 0
    %174 = vmatpush1.bf16.msra.mxu0 %v153
    %175 = vmatprep.subr.bf16.mxu0 0
    %176 = vmatpush1.bf16.msra.mxu0 %v152
    %177 = vmatprep.subr.bf16.mxu0 0
    %178 = vmatpush1.bf16.msra.mxu0 %v151
    %179 = vmatprep.subr.bf16.mxu0 0
    %180 = vmatpush2.bf16.msra.mxu0 0
    %181 = vmatprep.subr.bf16.mxu0 0
    %182 = vmatpush2.bf16.msra.mxu0 0
    %183 = vmatprep.subr.bf16.mxu0 0
    %184 = vmatpush2.bf16.msra.mxu0 0
    %185 = vmatprep.subr.bf16.mxu0 0
    %186 = vmatpush2.bf16.msra.mxu0 0
    %187 = vmatprep.subr.bf16.mxu0 0
    %188 = vmatpush2.bf16.msra.mxu0 0
    %189 = vmatprep.subr.bf16.mxu0 0
    %190 = vmatpush2.bf16.msra.mxu0 0
    %191 = vmatprep.subr.bf16.mxu0 0
    %192 = vmatpush2.bf16.msra.mxu0 0
    %193 = vmatprep.subr.bf16.mxu0 0
    %194 = vmatpush2.bf16.msra.mxu0 0
    %195 = vmatprep.mubr.bf16.mxu0 0
    %196 = vmatmul.mubr.bf16.gmra.mxu0 %v161
    %v197 = vpop.f32.mrf.mxu0
    %v198 = vadd.f32 0.0, %v197
    %v199 = vpop.f32.mrf.mxu0
    %v200 = vpop.f32.mrf.mxu0
    %v201 = vadd.f32 0.0, %v200
    %v202 = vpop.f32.mrf.mxu0
    %203 = vdwg.mxu0
    %v204 = vadd.f32 %v124, %v198
    %v205 = vadd.f32 %v125, %v201
    %206 = vst.msk [vmem:[#allocation2] sm:$0xff] %vm61, %v204
    %207 = vst.msk [vmem:[#allocation2 + $0x8] sm:$0xff] %vm61, %v205
    // Predicated region
    $region30: #{mlp_block_with_residual.1} parent=1 // pred_check
      %p208 = pneg %p28
    $region31: #{mlp_block_with_residual.1} parent=1 // pred_check_branch
      %210 = sbr.rel (%p208) target = $region33
    $region32: #{mlp_block_with_residual.1} parent=1 // pred_region
      %v211 = vld [vmem:[#allocation2] sm:$0xff]
      %v212 = vld [vmem:[#allocation2 + $0x8] sm:$0xff]
      %v213 = vld [vmem:[%s4] sm:$0x1]
      %v215 = vlaneseq
      %v216 = vshrl.u32 %v215, 7
      %v217 = vsub.s32 0, %v216
      %v218 = vrot.slane %v213, %v217
      %v220 = vadd.f32 %v211, %v218
      %v221 = vadd.f32 %v212, %v218
      %v222 = vld [vmem:[%s0] sm:$0xff]
      %v223 = vld [vmem:[%s0 + $0x8] sm:$0xff]
      %v224 = vadd.f32 %v222, %v220
      %v225 = vadd.f32 %v223, %v221
      %226 = vst.msk [vmem:[#allocation3] sm:$0xff] %vm61, %v224
      %227 = vst.msk [vmem:[#allocation3 + $0x8] sm:$0xff] %vm61, %v225
      %v228 = vld [vmem:[%s5] sm:$0xff]
      %v229 = vld [vmem:[%s5 + $0x8] sm:$0xff]
      %v230 = vsub.f32 %v224, %v228
      %v231 = vsub.f32 %v225, %v229
      %232 = vst.msk [vmem:[#allocation5] sm:$0xff] %vm61, %v230
      %233 = vst.msk [vmem:[#allocation5 + $0x8] sm:$0xff] %vm61, %v231
    $region33: #{mlp_block_with_residual.1} parent=1 // pred_fallthru
      _
    // Predicated region
    $region34: #{mlp_block_with_residual.1} parent=1 // pred_check
      _
    $region35: #{mlp_block_with_residual.1} parent=1 // pred_check_branch
      %235 = sbr.rel (0) target = $region37
    $region36: #{mlp_block_with_residual.1} parent=1 // pred_region
      %s237 = ssub.s32 256, 256
      %238 = vsyncadd [#allocation4], %s237
      %s239 = sshll.u32 [#allocation3], 4
      %s240 = int_to_ptr.vmem [resolvable:$true] %s239
      %245 = dma.vmem_to_hbm [thread:$0]  %s240, 256, %s6, [#allocation4], 128, 128, 8
    $region37: #{mlp_block_with_residual.1} parent=1 // pred_fallthru
      _
    // Predicated region
    $region38: #{mlp_block_with_residual.1} parent=1 // pred_check
      _
    $region39: #{mlp_block_with_residual.1} parent=1 // pred_check_branch
      %247 = sbr.rel (0) target = $region41
    $region40: #{mlp_block_with_residual.1} parent=1 // pred_region
      %s249 = ssub.s32 256, 256
      %250 = vsyncadd [#allocation6], %s249
      %s251 = sshll.u32 [#allocation5], 4
      %s252 = int_to_ptr.vmem [resolvable:$true] %s251
      %257 = dma.vmem_to_hbm [thread:$0]  %s252, 256, %s7, [#allocation6], 128, 128, 8
    $region41: #{mlp_block_with_residual.1} parent=1 // pred_fallthru
      _
    // Predicated region
    $region42: #{mlp_block_with_residual.1} parent=1 // pred_check
      _
    $region43: #{mlp_block_with_residual.1} parent=1 // pred_check_branch
      %259 = sbr.rel (0) target = $region45
    $region44: #{mlp_block_with_residual.1} parent=1 // pred_region
      %260 = dma.done [#allocation4], 256
    $region45: #{mlp_block_with_residual.1} parent=1 // pred_fallthru
      _
    // Predicated region
    $region46: #{mlp_block_with_residual.1} parent=1 // pred_check
      _
    $region47: #{mlp_block_with_residual.1} parent=1 // pred_check_branch
      %262 = sbr.rel (0) target = $region49
    $region48: #{mlp_block_with_residual.1} parent=1 // pred_region
      %263 = dma.done [#allocation6], 256
    $region49: #{mlp_block_with_residual.1} parent=1 // pred_fallthru
      _
    %264 = vsyncpa [#allocation4], 1
    %265 = vsyncpa [#allocation6], 1

</llo_original>
